<compile_context>
chip_gen: v6e
topology: v6e:2x2x1
jax: 0.10.0
libtpu: 0.0.40
codegen_flags: <defaults>
</compile_context>

<pallas_src>
import functools

import jax
import jax.numpy as jnp
from jax.experimental import pallas as pl
from jax.experimental.pallas import tpu as pltpu


def _round_up(v, m):
    return ((v + m - 1) // m) * m


def adv_classifier_kernel(x_ref, w1_ref, b1_ref, w2_ref, b2_ref, o_ref, *, out_dim):
    # Hoist bias reads once per grid step.
    b1 = b1_ref[...]                       # (1, H_pad)  f32 (zero on padded hidden units)
    b2 = b2_ref[...]                       # (1, O_pad)  f32 (-1e30 on padded classes)

    # x arrives as f32; cast to bf16 right before the MXU feed (cheap VPU op,
    # hidden under the input DMA).
    x = x_ref[...].astype(jnp.bfloat16)    # (tb, in_dim)

    # Hidden layer: bf16 MXU matmul, f32 accumulate; elementwise stays f32.
    h = jnp.dot(x, w1_ref[...], preferred_element_type=jnp.float32)
    h = jnp.maximum(h + b1, 0.0)           # padded hidden units stay exactly 0

    # Output layer: cast activations back to bf16 for the MXU.
    logits = jnp.dot(h.astype(jnp.bfloat16), w2_ref[...],
                     preferred_element_type=jnp.float32)
    logits = logits + b2                   # padded class cols -> ~-1e30

    # Numerically stable softmax over the lane-dense padded class axis.
    # Exact divide so rows sum to 1 to f32 precision (padded cols contribute
    # exactly 0 to the denominator).
    m = jnp.max(logits, axis=-1, keepdims=True)
    e = jnp.exp(logits - m)
    denom = jnp.sum(e, axis=-1, keepdims=True)
    probs = e / denom

    # Narrow store: only the real classes go back to HBM. out_dim << 128, so
    # raw HBM bytes dominate the masked-store slot cost here.
    o_ref[...] = probs[:, :out_dim].astype(o_ref.dtype)


def prepare_params(w1, b1, w2, b2):
    """One-time weight preprocessing (pad + bf16 cast); reuse across forward calls."""
    in_dim, hid = w1.shape
    out_dim = w2.shape[1]
    hid_pad = _round_up(hid, 128)
    out_pad = _round_up(out_dim, 128)

    # Zero-padded hidden units stay exactly 0 through bias-add/ReLU and
    # contribute nothing to the logits (their w2 rows are also zero).
    w1_p = jnp.pad(w1, ((0, 0), (0, hid_pad - hid))).astype(jnp.bfloat16)
    b1_p = jnp.pad(b1, ((0, 0), (0, hid_pad - hid)))                      # f32
    # Padded class columns get bias -1e30 so exp(logit - max) == 0 exactly.
    w2_p = jnp.pad(w2, ((0, hid_pad - hid), (0, out_pad - out_dim))).astype(jnp.bfloat16)
    b2_p = jnp.pad(b2, ((0, 0), (0, out_pad - out_dim)), constant_values=-1e30)  # f32
    return w1_p, b1_p, w2_p, b2_p, out_dim


def adversarial_classifier(x, params, *, block_b=1024):
    """x: (B, in_dim) f32; params: output of prepare_params().

    Computes softmax(relu(x @ w1 + b1) @ w2 + b2), equivalent to the PyTorch
    module's forward (GradientReversal is the identity in forward).
    """
    w1_p, b1_p, w2_p, b2_p, out_dim = params
    B, in_dim = x.shape
    hid_pad = w1_p.shape[1]
    out_pad = w2_p.shape[1]

    # Batch tile: multiple of 16 (bf16 sublane packing). Prefer >= 2 tiles so
    # ("parallel",) can shard across both TensorCores on v7x; cap at block_b
    # (512-2048 keeps ~85% of HBM roofline for large B).
    if B <= 16:
        tb = 16
    else:
        tb = min(block_b, _round_up(pl.cdiv(B, 2), 16))
    grid = (pl.cdiv(B, tb),)   # ragged last block handled by Pallas (no x padding)

    out = pl.pallas_call(
        functools.partial(adv_classifier_kernel, out_dim=out_dim),
        out_shape=jax.ShapeDtypeStruct((B, out_dim), jnp.float32),
        grid_spec=pltpu.PrefetchScalarGridSpec(
            num_scalar_prefetch=0,
            grid=grid,
            in_specs=[
                pl.BlockSpec((tb, in_dim), lambda i: (i, 0)),       # x: f32, batch-tiled
                pl.BlockSpec((in_dim, hid_pad), lambda i: (0, 0)),  # weights VMEM-resident
                pl.BlockSpec((1, hid_pad), lambda i: (0, 0)),
                pl.BlockSpec((hid_pad, out_pad), lambda i: (0, 0)),
                pl.BlockSpec((1, out_pad), lambda i: (0, 0)),
            ],
            out_specs=pl.BlockSpec((tb, out_dim), lambda i: (i, 0)),
        ),
        compiler_params=pltpu.CompilerParams(
            # Shard batch tiles over TensorCores (v7x megacore).
            dimension_semantics=("parallel",),
            # 32 MiB: raises v5e's 16 MiB default, matches v6e/v7x default, and
            # leaves headroom under v7x's 64 MiB physical VMEM. Tiny footprint
            # here; weights-resident strategy fits comfortably.
            vmem_limit_bytes=32 * 1024 * 1024,
        ),
    )(x, w1_p, b1_p, w2_p, b2_p)

    return out


def init_linear_params(key, in_features, out_features):
    # Deterministic init mimicking torch.nn.Linear default (uniform ±1/sqrt(in)).
    kw, kb = jax.random.split(key)
    bound = 1.0 / (in_features ** 0.5)
    w = jax.random.uniform(kw, (in_features, out_features),
                           minval=-bound, maxval=bound, dtype=jnp.float32)
    b = jax.random.uniform(kb, (1, out_features),
                           minval=-bound, maxval=bound, dtype=jnp.float32)
    return w, b


def reference_forward(x, w1, b1, w2, b2):
    h = jnp.maximum(x @ w1 + b1, 0.0)
    logits = h @ w2 + b2
    return jax.nn.softmax(logits, axis=-1)


if __name__ == "__main__":
    # Shapes consistent with the module: in_dim=32, hidden_dims=[64], out_dim=8.
    # B=64 -> tb=32, grid=(2,): exercises the pipelined, megacore-parallel grid.
    B, IN_DIM, HID, OUT_DIM = 64, 32, 64, 8

    key = jax.random.PRNGKey(0)
    kx, k1, k2 = jax.random.split(key, 3)

    x = jax.random.normal(kx, (B, IN_DIM), dtype=jnp.float32)
    w1, b1 = init_linear_params(k1, IN_DIM, HID)
    w2, b2 = init_linear_params(k2, HID, OUT_DIM)

    # GradientReversal is the identity in the forward pass; the -lambda scaling
    # only affects backward, so the kernel consumes x directly.
    # TODO(synk): backward (-lambda * grad) is not implemented (forward-only kernel).
    params = prepare_params(w1, b1, w2, b2)   # one-time pad/cast, reusable across calls
    out = adversarial_classifier(x, params)
    out = jax.block_until_ready(out)

    ref = reference_forward(x, w1, b1, w2, b2)
    assert out.shape == (B, OUT_DIM)
    # bf16 MXU inputs -> loosened tolerance vs the f32 reference.
    assert jnp.allclose(out, ref, atol=2e-2, rtol=2e-2), "mismatch vs reference"
    # Exact-divide softmax: rows sum to 1 to f32 precision.
    assert jnp.allclose(jnp.sum(out, axis=-1), 1.0, atol=1e-3)

    print("KERNEL_OK")
</pallas_src>

<mosaic_0001>
module attributes {stable_mosaic.version = 11 : i64} {
  func.func @adv_classifier_kernel(%arg0: i32, %arg1: memref<32x32xf32, #tpu.memory_space<vmem>>, %arg2: memref<32x128xbf16, #tpu.memory_space<vmem>>, %arg3: memref<1x128xf32, #tpu.memory_space<vmem>>, %arg4: memref<128x128xbf16, #tpu.memory_space<vmem>>, %arg5: memref<1x128xf32, #tpu.memory_space<vmem>>, %arg6: memref<32x8xf32, #tpu.memory_space<vmem>>) attributes {dimension_semantics = [#tpu.dimension_semantics<parallel>], iteration_bounds = array<i64: 2>, scalar_prefetch = 0 : i64, scratch_operands = 0 : i64, tpu.core_type = #tpu.core_type<tc>, window_params = [{transform_indices = @transform_0, window_bounds = array<i64: 32, 32>}, {pipeline_mode = #tpu.pipeline_mode<synchronous>, transform_indices = @transform_1, window_bounds = array<i64: 32, 128>}, {pipeline_mode = #tpu.pipeline_mode<synchronous>, transform_indices = @transform_2, window_bounds = array<i64: 1, 128>}, {pipeline_mode = #tpu.pipeline_mode<synchronous>, transform_indices = @transform_3, window_bounds = array<i64: 128, 128>}, {pipeline_mode = #tpu.pipeline_mode<synchronous>, transform_indices = @transform_4, window_bounds = array<i64: 1, 128>}, {transform_indices = @transform_5, window_bounds = array<i64: 32, 8>}]} {
    %c0 = arith.constant 0 : index
    %c0_0 = arith.constant 0 : index
    %0 = vector.load %arg3[%c0, %c0_0] : memref<1x128xf32, #tpu.memory_space<vmem>>, vector<1x128xf32>
    %c0_1 = arith.constant 0 : index
    %c0_2 = arith.constant 0 : index
    %1 = vector.load %arg5[%c0_1, %c0_2] : memref<1x128xf32, #tpu.memory_space<vmem>>, vector<1x128xf32>
    %c0_3 = arith.constant 0 : index
    %c0_4 = arith.constant 0 : index
    %2 = vector.load %arg1[%c0_3, %c0_4] : memref<32x32xf32, #tpu.memory_space<vmem>>, vector<32x32xf32>
    %3 = arith.truncf %2 : vector<32x32xf32> to vector<32x32xbf16>
    %c0_5 = arith.constant 0 : index
    %c0_6 = arith.constant 0 : index
    %4 = vector.load %arg2[%c0_5, %c0_6] : memref<32x128xbf16, #tpu.memory_space<vmem>>, vector<32x128xbf16>
    %cst = arith.constant dense<0.000000e+00> : vector<32x128xf32>
    %5 = tpu.matmul %3, %4, %cst {dimension_numbers = #tpu.dot_dimension_numbers<[1], [0], [0], [1], [0, 0, 1, 1], [], []>} : vector<32x32xbf16>, vector<32x128xbf16>, vector<32x128xf32> -> vector<32x128xf32>
    %6 = vector.broadcast %0 : vector<1x128xf32> to vector<32x128xf32>
    %7 = arith.addf %5, %6 : vector<32x128xf32>
    %cst_7 = arith.constant 0.000000e+00 : f32
    %8 = vector.broadcast %cst_7 : f32 to vector<32x128xf32>
    %9 = arith.maximumf %7, %8 : vector<32x128xf32>
    %10 = arith.truncf %9 : vector<32x128xf32> to vector<32x128xbf16>
    %c0_8 = arith.constant 0 : index
    %c0_9 = arith.constant 0 : index
    %11 = vector.load %arg4[%c0_8, %c0_9] : memref<128x128xbf16, #tpu.memory_space<vmem>>, vector<128x128xbf16>
    %cst_10 = arith.constant dense<0.000000e+00> : vector<32x128xf32>
    %12 = tpu.matmul %10, %11, %cst_10 {dimension_numbers = #tpu.dot_dimension_numbers<[1], [0], [0], [1], [0, 0, 1, 1], [], []>} : vector<32x128xbf16>, vector<128x128xbf16>, vector<32x128xf32> -> vector<32x128xf32>
    %13 = vector.broadcast %1 : vector<1x128xf32> to vector<32x128xf32>
    %14 = arith.addf %12, %13 : vector<32x128xf32>
    %cst_11 = arith.constant dense<0xFF800000> : vector<32xf32>
    %15 = vector.multi_reduction <maximumf>, %14, %cst_11 [1] : vector<32x128xf32> to vector<32xf32>
    %16 = vector.shape_cast %15 : vector<32xf32> to vector<32x1xf32>
    %17 = vector.broadcast %16 : vector<32x1xf32> to vector<32x128xf32>
    %18 = arith.subf %14, %17 : vector<32x128xf32>
    %19 = math.exp %18 : vector<32x128xf32>
    %cst_12 = arith.constant dense<0.000000e+00> : vector<32xf32>
    %20 = vector.multi_reduction <add>, %19, %cst_12 [1] : vector<32x128xf32> to vector<32xf32>
    %21 = vector.shape_cast %20 : vector<32xf32> to vector<32x1xf32>
    %22 = vector.broadcast %21 : vector<32x1xf32> to vector<32x128xf32>
    %23 = arith.divf %19, %22 : vector<32x128xf32>
    %24 = vector.extract_strided_slice %23 {offsets = [0, 0], sizes = [32, 8], strides = [1, 1]} : vector<32x128xf32> to vector<32x8xf32>
    %c0_13 = arith.constant 0 : index
    %c0_14 = arith.constant 0 : index
    %25 = vector.load %arg6[%c0_13, %c0_14] : memref<32x8xf32, #tpu.memory_space<vmem>>, vector<32x8xf32>
    tpu.vector_store %arg6[%c0_13, %c0_14], %24 {strides = array<i32>} : memref<32x8xf32, #tpu.memory_space<vmem>>, vector<32x8xf32>,
    return
  }
  func.func @transform_0(%arg0: i32) -> (i32, i32) {
    %c0_i32 = arith.constant 0 : i32
    %c0_i32_0 = arith.constant 0 : i32
    return %arg0, %c0_i32 : i32, i32
  }
  func.func @transform_1(%arg0: i32) -> (i32, i32) {
    %c0_i32 = arith.constant 0 : i32
    %c0_i32_0 = arith.constant 0 : i32
    %c0_i32_1 = arith.constant 0 : i32
    return %c0_i32, %c0_i32_0 : i32, i32
  }
  func.func @transform_2(%arg0: i32) -> (i32, i32) {
    %c0_i32 = arith.constant 0 : i32
    %c0_i32_0 = arith.constant 0 : i32
    %c0_i32_1 = arith.constant 0 : i32
    return %c0_i32, %c0_i32_0 : i32, i32
  }
  func.func @transform_3(%arg0: i32) -> (i32, i32) {
    %c0_i32 = arith.constant 0 : i32
    %c0_i32_0 = arith.constant 0 : i32
    %c0_i32_1 = arith.constant 0 : i32
    return %c0_i32, %c0_i32_0 : i32, i32
  }
  func.func @transform_4(%arg0: i32) -> (i32, i32) {
    %c0_i32 = arith.constant 0 : i32
    %c0_i32_0 = arith.constant 0 : i32
    %c0_i32_1 = arith.constant 0 : i32
    return %c0_i32, %c0_i32_0 : i32, i32
  }
  func.func @transform_5(%arg0: i32) -> (i32, i32) {
    %c0_i32 = arith.constant 0 : i32
    %c0_i32_0 = arith.constant 0 : i32
    return %arg0, %c0_i32 : i32, i32
  }
}

</mosaic_0001>

<llo_original>
// kernel: tpu_custom_call.1
$region0: #{tpu_custom_call.1}
  #allocation0 [shape = 'u32[]', space=smem, size = 0x4, offset = 0x4, fixed_abs, tag = 'smem constant byte address 0x4 - core index']
  #allocation1 [shape = 'u32[144,128]{1,0:T(1,128)}', space=vmem, size = 0x12000, scoped, tag = 'internal scratch']
  %s0 = inlined_call_operand.vmem [shape: f32[64,32], index: 0, kind: input, shape index: {}]
  %s1 = inlined_call_operand.vmem [shape: bf16[32,128], index: 1, kind: input, shape index: {}]
  %s2 = inlined_call_operand.vmem [shape: f32[1,128], index: 2, kind: input, shape index: {}]
  %s3 = inlined_call_operand.vmem [shape: bf16[128,128], index: 3, kind: input, shape index: {}]
  %s4 = inlined_call_operand.vmem [shape: f32[1,128], index: 4, kind: input, shape index: {}]
  %s5 = inlined_call_operand.vmem [shape: f32[64,8], index: 5, kind: output, shape index: {}]
  %s6 = sld [smem:[#allocation0]]
  $region53: #{tpu_custom_call.1} parent=0
    _
  %s8 = ssub.s32 1, %s6
  %s9 = scalar_select 0, %s8, %s6
  loop: start=0, step=1, limit=4
  $region2: #{tpu_custom_call.1} parent=0 // loop_pre_header
    _
  $region3: #{tpu_custom_call.1} parent=0 // loop_header
    %s11 = sphi 0, %s15
    %p12 = scmp.ge.s32.totalorder %s11, 4
    %s21 = sphi 0, %s23
    %s24 = sphi 0, %s21
    %s25 = sphi 0, %s24
    %s41 = sphi 0, %s25
    %s45 = sphi 0, %s45
    %s47 = sphi 0, %s45
    %s48 = sphi 0, %s47
    %s62 = sphi 0, %s48
    %s66 = sphi 0, %s66
    %s68 = sphi 0, %s66
    %s69 = sphi 0, %s68
    %s83 = sphi 0, %s69
    %s87 = sphi 0, %s87
    %s89 = sphi 0, %s87
    %s90 = sphi 0, %s89
    %s104 = sphi 0, %s90
    %s108 = sphi 0, %s108
    %s110 = sphi 0, %s108
    %s111 = sphi 0, %s110
    %s125 = sphi 0, %s111
    %s131 = sphi 0, %s133
    %s134 = sphi 0, %s131
    %s135 = sphi 0, %s134
    %s151 = sphi 0, %s135
  $region4: #{tpu_custom_call.1} parent=0 // loop_header_branch
    %14 = sbr.rel (%p12) target = $region8
  $region5: #{tpu_custom_call.1} parent=0 // loop_body
    %s16 = ssub.s32 %s11, 1
    %s17 = ssub.s32 %s11, 2
    %s18 = sadd.s32 %s11, 1
    %s19 = ssub.s32 %s11, %s18
    %p20 = scmp.eq.s32.totalorder %s19, 0
    %s22 = sadd.s32 %s21, 1
    %s23 = scalar_select %p20, %s21, %s22
    %p26 = pneg %p20
    %p27 = scmp.eq.s32.totalorder %s11, 1
    %p28 = por %p26, %p27
    %p29 = scmp.ne.s32.totalorder %s21, %s24
    %p30 = scmp.eq.s32.totalorder %s11, 0
    %p31 = por %p29, %p30
    %p32 = scmp.ne.s32.totalorder %s21, %s24
    %p33 = scmp.eq.s32.totalorder %s16, 1
    %p34 = por %p32, %p33
    %p35 = scmp.ne.s32.totalorder %s24, %s25
    %p36 = scmp.eq.s32.totalorder %s16, 0
    %p37 = por %p35, %p36
    %p38 = scmp.ne.s32.totalorder %s24, %s25
    %p39 = scmp.eq.s32.totalorder %s17, 1
    %p40 = por %p38, %p39
    %p42 = scmp.ne.s32.totalorder %s25, %s41
    %p43 = scmp.eq.s32.totalorder %s17, 0
    %p44 = por %p42, %p43
    %s46 = sadd.s32 %s45, 1
    %p49 = scmp.eq.s32.totalorder %s11, 1
    %p50 = scmp.ne.s32.totalorder %s45, %s47
    %p51 = scmp.eq.s32.totalorder %s11, 0
    %p52 = por %p50, %p51
    %p53 = scmp.ne.s32.totalorder %s45, %s47
    %p54 = scmp.eq.s32.totalorder %s16, 1
    %p55 = por %p53, %p54
    %p56 = scmp.ne.s32.totalorder %s47, %s48
    %p57 = scmp.eq.s32.totalorder %s16, 0
    %p58 = por %p56, %p57
    %p59 = scmp.ne.s32.totalorder %s47, %s48
    %p60 = scmp.eq.s32.totalorder %s17, 1
    %p61 = por %p59, %p60
    %p63 = scmp.ne.s32.totalorder %s48, %s62
    %p64 = scmp.eq.s32.totalorder %s17, 0
    %p65 = por %p63, %p64
    %s67 = sadd.s32 %s66, 1
    %p70 = scmp.eq.s32.totalorder %s11, 1
    %p71 = scmp.ne.s32.totalorder %s66, %s68
    %p72 = scmp.eq.s32.totalorder %s11, 0
    %p73 = por %p71, %p72
    %p74 = scmp.ne.s32.totalorder %s66, %s68
    %p75 = scmp.eq.s32.totalorder %s16, 1
    %p76 = por %p74, %p75
    %p77 = scmp.ne.s32.totalorder %s68, %s69
    %p78 = scmp.eq.s32.totalorder %s16, 0
    %p79 = por %p77, %p78
    %p80 = scmp.ne.s32.totalorder %s68, %s69
    %p81 = scmp.eq.s32.totalorder %s17, 1
    %p82 = por %p80, %p81
    %p84 = scmp.ne.s32.totalorder %s69, %s83
    %p85 = scmp.eq.s32.totalorder %s17, 0
    %p86 = por %p84, %p85
    %s88 = sadd.s32 %s87, 1
    %p91 = scmp.eq.s32.totalorder %s11, 1
    %p92 = scmp.ne.s32.totalorder %s87, %s89
    %p93 = scmp.eq.s32.totalorder %s11, 0
    %p94 = por %p92, %p93
    %p95 = scmp.ne.s32.totalorder %s87, %s89
    %p96 = scmp.eq.s32.totalorder %s16, 1
    %p97 = por %p95, %p96
    %p98 = scmp.ne.s32.totalorder %s89, %s90
    %p99 = scmp.eq.s32.totalorder %s16, 0
    %p100 = por %p98, %p99
    %p101 = scmp.ne.s32.totalorder %s89, %s90
    %p102 = scmp.eq.s32.totalorder %s17, 1
    %p103 = por %p101, %p102
    %p105 = scmp.ne.s32.totalorder %s90, %s104
    %p106 = scmp.eq.s32.totalorder %s17, 0
    %p107 = por %p105, %p106
    %s109 = sadd.s32 %s108, 1
    %p112 = scmp.eq.s32.totalorder %s11, 1
    %p113 = scmp.ne.s32.totalorder %s108, %s110
    %p114 = scmp.eq.s32.totalorder %s11, 0
    %p115 = por %p113, %p114
    %p116 = scmp.ne.s32.totalorder %s108, %s110
    %p117 = scmp.eq.s32.totalorder %s16, 1
    %p118 = por %p116, %p117
    %p119 = scmp.ne.s32.totalorder %s110, %s111
    %p120 = scmp.eq.s32.totalorder %s16, 0
    %p121 = por %p119, %p120
    %p122 = scmp.ne.s32.totalorder %s110, %s111
    %p123 = scmp.eq.s32.totalorder %s17, 1
    %p124 = por %p122, %p123
    %p126 = scmp.ne.s32.totalorder %s111, %s125
    %p127 = scmp.eq.s32.totalorder %s17, 0
    %p128 = por %p126, %p127
    %s129 = ssub.s32 %s11, %s18
    %p130 = scmp.eq.s32.totalorder %s129, 0
    %s132 = sadd.s32 %s131, 1
    %s133 = scalar_select %p130, %s131, %s132
    %p136 = pneg %p130
    %p137 = scmp.eq.s32.totalorder %s11, 1
    %p138 = por %p136, %p137
    %p139 = scmp.ne.s32.totalorder %s131, %s134
    %p140 = scmp.eq.s32.totalorder %s11, 0
    %p141 = por %p139, %p140
    %p142 = scmp.ne.s32.totalorder %s131, %s134
    %p143 = scmp.eq.s32.totalorder %s16, 1
    %p144 = por %p142, %p143
    %p145 = scmp.ne.s32.totalorder %s134, %s135
    %p146 = scmp.eq.s32.totalorder %s16, 0
    %p147 = por %p145, %p146
    %p148 = scmp.ne.s32.totalorder %s134, %s135
    %p149 = scmp.eq.s32.totalorder %s17, 1
    %p150 = por %p148, %p149
    %p152 = scmp.ne.s32.totalorder %s135, %s151
    %p153 = scmp.eq.s32.totalorder %s17, 0
    %p154 = por %p152, %p153
    %p155 = scmp.le.s32.totalorder 1, %s11
    %p156 = scmp.lt.s32.totalorder %s11, 3
    %p157 = pnand %p155, %p156
    %p158 = pneg %p157
    // Predicated region
    $region9: #{tpu_custom_call.1} parent=5 // pred_check
      _
    $region10: #{tpu_custom_call.1} parent=5 // pred_check_branch
      %160 = sbr.rel (%p157) target = $region12
    $region11: #{tpu_custom_call.1} parent=5 // pred_region
      %s161 = ssub.s32 %s11, 1
      // Predicated region
      $region13: #{tpu_custom_call.1} parent=11 // pred_check
        %p162 = pneg %p58
      $region14: #{tpu_custom_call.1} parent=11 // pred_check_branch
        %164 = sbr.rel (%p162) target = $region16
      $region15: #{tpu_custom_call.1} parent=11 // pred_region
        _
      $region16: #{tpu_custom_call.1} parent=11 // pred_fallthru
        _
      // Predicated region
      $region17: #{tpu_custom_call.1} parent=11 // pred_check
        %p165 = pneg %p79
      $region18: #{tpu_custom_call.1} parent=11 // pred_check_branch
        %167 = sbr.rel (%p165) target = $region20
      $region19: #{tpu_custom_call.1} parent=11 // pred_region
        _
      $region20: #{tpu_custom_call.1} parent=11 // pred_fallthru
        _
      // Predicated region
      $region21: #{tpu_custom_call.1} parent=11 // pred_check
        %p168 = pneg %p100
      $region22: #{tpu_custom_call.1} parent=11 // pred_check_branch
        %170 = sbr.rel (%p168) target = $region24
      $region23: #{tpu_custom_call.1} parent=11 // pred_region
        _
      $region24: #{tpu_custom_call.1} parent=11 // pred_fallthru
        _
      // Predicated region
      $region25: #{tpu_custom_call.1} parent=11 // pred_check
        %p171 = pneg %p121
      $region26: #{tpu_custom_call.1} parent=11 // pred_check_branch
        %173 = sbr.rel (%p171) target = $region28
      $region27: #{tpu_custom_call.1} parent=11 // pred_region
        _
      $region28: #{tpu_custom_call.1} parent=11 // pred_fallthru
        _
    $region12: #{tpu_custom_call.1} parent=5 // pred_fallthru
      _
    %p174 = scmp.lt.s32.totalorder %s11, 2
    // Predicated region
    $region29: #{tpu_custom_call.1} parent=5 // pred_check
      %p175 = pneg %p174
    $region30: #{tpu_custom_call.1} parent=5 // pred_check_branch
      %177 = sbr.rel (%p175) target = $region32
    $region31: #{tpu_custom_call.1} parent=5 // pred_region
      // Predicated region
      $region33: #{tpu_custom_call.1} parent=31 // pred_check
        %p178 = pneg %p31
      $region34: #{tpu_custom_call.1} parent=31 // pred_check_branch
        %180 = sbr.rel (%p178) target = $region36
      $region35: #{tpu_custom_call.1} parent=31 // pred_region
        %s181 = smul.u32 4, %s11
        %p182 = scmp.lt.s32.totalorder %s181, 7
        %s183 = scalar_select %p182, %s181, 7
        %s184 = smul.addr %s183, 8
        %s185 = scalar_lea.vmem %s0, %s184
        %s186 = smul.u32 4, %s11
      $region36: #{tpu_custom_call.1} parent=31 // pred_fallthru
        _
    $region32: #{tpu_custom_call.1} parent=5 // pred_fallthru
      _
    %p187 = scmp.le.s32.totalorder 1, %s11
    %p188 = scmp.lt.s32.totalorder %s11, 3
    %p189 = pnand %p187, %p188
    %p190 = pneg %p189
    // Predicated region
    $region37: #{tpu_custom_call.1} parent=5 // pred_check
      _
    $region38: #{tpu_custom_call.1} parent=5 // pred_check_branch
      %192 = sbr.rel (%p189) target = $region40
    $region39: #{tpu_custom_call.1} parent=5 // pred_region
      %s193 = ssub.s32 %s11, 1
      %s194 = smul.u32 4, %s16
      %p195 = scmp.lt.s32.totalorder %s194, 7
      %s196 = scalar_select %p195, %s194, 7
      %s197 = smul.addr %s196, 8
      %s198 = scalar_lea.vmem %s0, %s197
      %p199 = pneg %p37
      %p200 = pneg %p34
      %p201 = pneg %p58
      %p202 = pneg %p55
      %p203 = pneg %p79
      %p204 = pneg %p76
      %p205 = pneg %p100
      %p206 = pneg %p97
      %p207 = pneg %p121
      %p208 = pneg %p118
      %p209 = pneg %p147
      %p210 = pneg %p144
      %s211 = smul.u32 4, %s16
      %p212 = scmp.lt.s32.totalorder %s211, 7
      %s213 = scalar_select %p212, %s211, 7
      %s214 = smul.addr %s213, 8
      %s215 = scalar_lea.vmem %s5, %s214
      %s216 = smul.u32 4, %s16
      %p217 = scmp.lt.s32.totalorder %s216, 7
      %s218 = scalar_select %p217, %s216, 7
      %s219 = smul.addr %s218, 8
      %s220 = scalar_lea.vmem %s0, %s219
      %s221 = smul.u32 4, %s16
      %s222 = smul.u32 4, %s16
      %p223 = scmp.lt.s32.totalorder %s222, 7
      %s224 = scalar_select %p223, %s222, 7
      %s225 = smul.addr %s224, 8
      %s226 = scalar_lea.vmem %s5, %s225
      %s227 = smul.u32 4, %s16
      %v229 = vld [vmem:[%s2] sm:$0x1]
      %v230 = vld [vmem:[%s4] sm:$0x1]
      %v231 = vld [vmem:[%s220] sm:$0xff]
      %v232 = vld [vmem:[%s220 + $0x8] sm:$0xff]
      %v233 = vld [vmem:[%s220 + $0x10] sm:$0xff]
      %v234 = vld [vmem:[%s220 + $0x18] sm:$0xff]
      %v235 = vpack.c.bf16 %v232, %v231
      %v236 = vpack.c.bf16 %v234, %v233
      %v237 = vld [vmem:[%s1] sm:$0xf]
      %v238 = vld [vmem:[%s1 + $0x4] sm:$0xf]
      %v239 = vld [vmem:[%s1 + $0x8] sm:$0xf]
      %v240 = vld [vmem:[%s1 + $0xc] sm:$0xf]
      %v242 = vlaneseq
      %v243 = vshrl.u32 %v242, 7
      %v244 = vsub.s32 0, %v243
      %v245 = vrot.slane %v229, %v244
      %v251 = vunpack.c.l.b16 %v237
      %v252 = vunpack.c.l.b16 %v238
      %v253 = vunpack.c.l.b16 %v239
      %v254 = vunpack.c.l.b16 %v240
      %v255 = vpack.c.b16 %v252, %v251
      %v256 = vpack.c.b16 %v254, %v253
      %vm259 = vcmask 261120
      %v261 = vsel %vm259, %v235, 0
      %v264 = vsel %vm259, %v236, 0
      %266 = vmatprep.subr.bf16.mxu0 0
      %267 = vmatpush1.bf16.msra.mxu0 0
      %268 = vmatprep.subr.bf16.mxu0 0
      %269 = vmatpush1.bf16.msra.mxu0 0
      %270 = vmatprep.subr.bf16.mxu0 0
      %271 = vmatpush1.bf16.msra.mxu0 0
      %272 = vmatprep.subr.bf16.mxu0 0
      %273 = vmatpush1.bf16.msra.mxu0 0
      %274 = vmatprep.subr.bf16.mxu0 0
      %275 = vmatpush1.bf16.msra.mxu0 0
      %276 = vmatprep.subr.bf16.mxu0 0
      %277 = vmatpush1.bf16.msra.mxu0 0
      %278 = vmatprep.subr.bf16.mxu0 0
      %279 = vmatpush1.bf16.msra.mxu0 %v256
      %280 = vmatprep.subr.bf16.mxu0 0
      %281 = vmatpush1.bf16.msra.mxu0 %v255
      %282 = vmatprep.subr.bf16.mxu0 0
      %283 = vmatpush2.bf16.msra.mxu0 0
      %284 = vmatprep.subr.bf16.mxu0 0
      %285 = vmatpush2.bf16.msra.mxu0 0
      %286 = vmatprep.subr.bf16.mxu0 0
      %287 = vmatpush2.bf16.msra.mxu0 0
      %288 = vmatprep.subr.bf16.mxu0 0
      %289 = vmatpush2.bf16.msra.mxu0 0
      %290 = vmatprep.subr.bf16.mxu0 0
      %291 = vmatpush2.bf16.msra.mxu0 0
      %292 = vmatprep.subr.bf16.mxu0 0
      %293 = vmatpush2.bf16.msra.mxu0 0
      %294 = vmatprep.subr.bf16.mxu0 0
      %295 = vmatpush2.bf16.msra.mxu0 0
      %296 = vmatprep.subr.bf16.mxu0 0
      %297 = vmatpush2.bf16.msra.mxu0 0
      %298 = vmatprep.mubr.bf16.mxu0 0
      %299 = vmatmul.mubr.bf16.gmra.mxu0 %v261
      %v300 = vpop.f32.mrf.mxu0
      %v301 = vadd.f32 %v245, %v300
      %v302 = vpop.f32.mrf.mxu0
      %v303 = vpop.f32.mrf.mxu0
      %v304 = vadd.f32 %v245, %v303
      %v305 = vpop.f32.mrf.mxu0
      %306 = vmatprep.mubr.bf16.mxu0 0
      %307 = vmatmul.mubr.bf16.gmra.mxu0 %v264
      %v308 = vpop.f32.mrf.mxu0
      %v309 = vadd.f32 %v245, %v308
      %v310 = vpop.f32.mrf.mxu0
      %v311 = vpop.f32.mrf.mxu0
      %v312 = vadd.f32 %v245, %v311
      %v313 = vpop.f32.mrf.mxu0
      %314 = vdwg.mxu0
      %v315 = vmax.f32 %v301, 0.0
      %v316 = vmax.f32 %v304, 0.0
      %v317 = vmax.f32 %v309, 0.0
      %v318 = vmax.f32 %v312, 0.0
      %v319 = vpack.c.bf16 %v316, %v315
      %v320 = vpack.c.bf16 %v318, %v317
      %v321 = vld [vmem:[%s3] sm:$0xf]
      %v322 = vld [vmem:[%s3 + $0x4] sm:$0xf]
      %v323 = vld [vmem:[%s3 + $0x8] sm:$0xf]
      %v324 = vld [vmem:[%s3 + $0xc] sm:$0xf]
      %v325 = vld [vmem:[%s3 + $0x10] sm:$0xf]
      %v326 = vld [vmem:[%s3 + $0x14] sm:$0xf]
      %v327 = vld [vmem:[%s3 + $0x18] sm:$0xf]
      %v328 = vld [vmem:[%s3 + $0x1c] sm:$0xf]
      %v329 = vld [vmem:[%s3 + $0x20] sm:$0xf]
      %v330 = vld [vmem:[%s3 + $0x24] sm:$0xf]
      %v331 = vld [vmem:[%s3 + $0x28] sm:$0xf]
      %v332 = vld [vmem:[%s3 + $0x2c] sm:$0xf]
      %v333 = vld [vmem:[%s3 + $0x30] sm:$0xf]
      %v334 = vld [vmem:[%s3 + $0x34] sm:$0xf]
      %v335 = vld [vmem:[%s3 + $0x38] sm:$0xf]
      %v336 = vld [vmem:[%s3 + $0x3c] sm:$0xf]
      %v338 = vlaneseq
      %v339 = vshrl.u32 %v338, 7
      %v340 = vsub.s32 0, %v339
      %v341 = vrot.slane %v230, %v340
      %v359 = vunpack.c.l.b16 %v321
      %v360 = vunpack.c.l.b16 %v322
      %v361 = vunpack.c.l.b16 %v323
      %v362 = vunpack.c.l.b16 %v324
      %v363 = vunpack.c.l.b16 %v325
      %v364 = vunpack.c.l.b16 %v326
      %v365 = vunpack.c.l.b16 %v327
      %v366 = vunpack.c.l.b16 %v328
      %v367 = vunpack.c.l.b16 %v329
      %v368 = vunpack.c.l.b16 %v330
      %v369 = vunpack.c.l.b16 %v331
      %v370 = vunpack.c.l.b16 %v332
      %v371 = vunpack.c.l.b16 %v333
      %v372 = vunpack.c.l.b16 %v334
      %v373 = vunpack.c.l.b16 %v335
      %v374 = vunpack.c.l.b16 %v336
      %v375 = vpack.c.b16 %v360, %v359
      %v376 = vpack.c.b16 %v362, %v361
      %v377 = vpack.c.b16 %v364, %v363
      %v378 = vpack.c.b16 %v366, %v365
      %v379 = vpack.c.b16 %v368, %v367
      %v380 = vpack.c.b16 %v370, %v369
      %v381 = vpack.c.b16 %v372, %v371
      %v382 = vpack.c.b16 %v374, %v373
      %391 = vmatprep.subr.bf16.mxu0 0
      %392 = vmatpush1.bf16.msra.mxu0 %v382
      %393 = vmatprep.subr.bf16.mxu0 0
      %394 = vmatpush1.bf16.msra.mxu0 %v381
      %395 = vmatprep.subr.bf16.mxu0 0
      %396 = vmatpush1.bf16.msra.mxu0 %v380
      %397 = vmatprep.subr.bf16.mxu0 0
      %398 = vmatpush1.bf16.msra.mxu0 %v379
      %399 = vmatprep.subr.bf16.mxu0 0
      %400 = vmatpush1.bf16.msra.mxu0 %v378
      %401 = vmatprep.subr.bf16.mxu0 0
      %402 = vmatpush1.bf16.msra.mxu0 %v377
      %403 = vmatprep.subr.bf16.mxu0 0
      %404 = vmatpush1.bf16.msra.mxu0 %v376
      %405 = vmatprep.subr.bf16.mxu0 0
      %406 = vmatpush1.bf16.msra.mxu0 %v375
      %407 = vmatprep.subr.bf16.mxu0 0
      %408 = vmatpush2.bf16.msra.mxu0 0
      %409 = vmatprep.subr.bf16.mxu0 0
      %410 = vmatpush2.bf16.msra.mxu0 0
      %411 = vmatprep.subr.bf16.mxu0 0
      %412 = vmatpush2.bf16.msra.mxu0 0
      %413 = vmatprep.subr.bf16.mxu0 0
      %414 = vmatpush2.bf16.msra.mxu0 0
      %415 = vmatprep.subr.bf16.mxu0 0
      %416 = vmatpush2.bf16.msra.mxu0 0
      %417 = vmatprep.subr.bf16.mxu0 0
      %418 = vmatpush2.bf16.msra.mxu0 0
      %419 = vmatprep.subr.bf16.mxu0 0
      %420 = vmatpush2.bf16.msra.mxu0 0
      %421 = vmatprep.subr.bf16.mxu0 0
      %422 = vmatpush2.bf16.msra.mxu0 0
      %423 = vmatprep.mubr.bf16.mxu0 0
      %424 = vmatmul.mubr.bf16.gmra.mxu0 %v319
      %v425 = vpop.f32.mrf.mxu0
      %v426 = vadd.f32 %v341, %v425
      %v427 = vpop.f32.mrf.mxu0
      %v428 = vpop.f32.mrf.mxu0
      %v429 = vadd.f32 %v341, %v428
      %v430 = vpop.f32.mrf.mxu0
      %431 = vmatprep.mubr.bf16.mxu0 0
      %432 = vmatmul.mubr.bf16.gmra.mxu0 %v320
      %v433 = vpop.f32.mrf.mxu0
      %v434 = vadd.f32 %v341, %v433
      %v435 = vpop.f32.mrf.mxu0
      %v436 = vpop.f32.mrf.mxu0
      %v437 = vadd.f32 %v341, %v436
      %v438 = vpop.f32.mrf.mxu0
      %439 = vdwg.mxu0
      %440 = vmax.xlane.f32.xlu0 %v426
      %v441 = vpop.xlane.xlu0 %440
      %442 = vmax.xlane.f32.xlu0 %v429
      %v443 = vpop.xlane.xlu0 %442
      %444 = vmax.xlane.f32.xlu0 %v434
      %v445 = vpop.xlane.xlu0 %444
      %446 = vmax.xlane.f32.xlu0 %v437
      %v447 = vpop.xlane.xlu0 %446
      %v448 = vsub.f32 %v426, %v441
      %v449 = vsub.f32 %v429, %v443
      %v450 = vsub.f32 %v434, %v445
      %v451 = vsub.f32 %v437, %v447
      %v452 = vmul.f32 %v448, 1.442695
      %v453 = vpow.pop %v452
      %v454 = vmul.f32 %v449, 1.442695
      %v455 = vpow.pop %v454
      %v456 = vmul.f32 %v450, 1.442695
      %v457 = vpow.pop %v456
      %v458 = vmul.f32 %v451, 1.442695
      %v459 = vpow.pop %v458
      %460 = vadd.xlane.f32.xlu0 %v453
      %v461 = vpop.xlane.xlu0 %460
      %462 = vadd.xlane.f32.xlu0 %v455
      %v463 = vpop.xlane.xlu0 %462
      %464 = vadd.xlane.f32.xlu0 %v457
      %v465 = vpop.xlane.xlu0 %464
      %466 = vadd.xlane.f32.xlu0 %v459
      %v467 = vpop.xlane.xlu0 %466
      %v468 = vrcp.pop %v461
      %v469 = vmul.f32 %v453, %v468
      %v470 = vrcp.pop %v463
      %v471 = vmul.f32 %v455, %v470
      %v472 = vrcp.pop %v465
      %v473 = vmul.f32 %v457, %v472
      %v474 = vrcp.pop %v467
      %v475 = vmul.f32 %v459, %v474
      %vm476 = vcmask 64512
      %477 = vst.msk [vmem:[%s226] sm:$0xff] %vm476, %v469
      %478 = vst.msk [vmem:[%s226 + $0x8] sm:$0xff] %vm476, %v471
      %479 = vst.msk [vmem:[%s226 + $0x10] sm:$0xff] %vm476, %v473
      %480 = vst.msk [vmem:[%s226 + $0x18] sm:$0xff] %vm476, %v475
      %s481 = smul.u32 4, %s16
      %p482 = scmp.lt.s32.totalorder %s481, 7
      %s483 = scalar_select %p482, %s481, 7
      %s484 = smul.addr %s483, 8
      %s485 = scalar_lea.vmem %s5, %s484
      // Predicated region
      $region41: #{tpu_custom_call.1} parent=39 // pred_check
        %p486 = pneg %p144
      $region42: #{tpu_custom_call.1} parent=39 // pred_check_branch
        %488 = sbr.rel (%p486) target = $region44
      $region43: #{tpu_custom_call.1} parent=39 // pred_region
        %s489 = smul.u32 4, %s16
      $region44: #{tpu_custom_call.1} parent=39 // pred_fallthru
        _
    $region40: #{tpu_custom_call.1} parent=5 // pred_fallthru
      _
    %p490 = scmp.le.s32.totalorder 2, %s11
    // Predicated region
    $region45: #{tpu_custom_call.1} parent=5 // pred_check
      %p491 = pneg %p490
    $region46: #{tpu_custom_call.1} parent=5 // pred_check_branch
      %493 = sbr.rel (%p491) target = $region48
    $region47: #{tpu_custom_call.1} parent=5 // pred_region
      %s494 = ssub.s32 %s11, 2
      // Predicated region
      $region49: #{tpu_custom_call.1} parent=47 // pred_check
        %p495 = pneg %p150
      $region50: #{tpu_custom_call.1} parent=47 // pred_check_branch
        %497 = sbr.rel (%p495) target = $region52
      $region51: #{tpu_custom_call.1} parent=47 // pred_region
        %s498 = smul.u32 4, %s17
        %p499 = scmp.lt.s32.totalorder %s498, 7
        %s500 = scalar_select %p499, %s498, 7
        %s501 = smul.addr %s500, 8
        %s502 = scalar_lea.vmem %s5, %s501
      $region52: #{tpu_custom_call.1} parent=47 // pred_fallthru
        _
    $region48: #{tpu_custom_call.1} parent=5 // pred_fallthru
      _
  $region6: #{tpu_custom_call.1} parent=0 // loop_footer
    %s15 = sadd.s32 1, %s11
  $region7: #{tpu_custom_call.1} parent=0 // loop_footer_branch
    %10 = sbr.rel target = $region3
  $region8: #{tpu_custom_call.1} parent=0 // loop_exit
    _

</llo_original>
